<compile_context>
chip_gen: v6e
topology: v6e:2x2x1
jax: 0.10.0
libtpu: 0.0.40
codegen_flags: <defaults>
</compile_context>

<pallas_src>
import functools
import math

import jax
import jax.numpy as jnp
from jax.experimental import pallas as pl
from jax.experimental.pallas import tpu as pltpu

_LANES = 128
_SUBLANES = 8


def _smooth_l1_sum_kernel(pred_ref, gt_ref, out_ref, acc_ref, *,
                          inv_n, rows_total, tile_r, mask_tail):
    """Smooth-L1 (beta=1.0) partial-sum kernel over a (rows, 128) slab.

    Grid: (num_tiles,) -- the sequential reduction axis.  acc_ref is a
    (tile_r, 128) f32 VMEM accumulator (pure VPU adds per step); out_ref is a
    single resident (8, 128) block holding the broadcast scalar result
    (wrapper reads [0, 0]).
    """
    k = pl.program_id(0)

    @pl.when(k == 0)
    def _init():
        acc_ref[...] = jnp.zeros_like(acc_ref)

    # Cast in VMEM (inputs stream in their native dtype, e.g. bf16).
    d = pred_ref[...].astype(jnp.float32) - gt_ref[...].astype(jnp.float32)
    ad = jnp.abs(d)
    loss = jnp.where(ad < 1.0, 0.5 * d * d, ad - 0.5)

    if mask_tail:
        # The final block is partial along rows; Pallas pads partial blocks
        # with undefined data, so zero those rows' contribution.
        row_idx = k * tile_r + jax.lax.broadcasted_iota(jnp.int32, loss.shape, 0)
        loss = jnp.where(row_idx < rows_total, loss, 0.0)

    acc_ref[...] += loss  # per-lane partial sums, VPU only

    @pl.when(k == pl.num_programs(0) - 1)
    def _finalize():
        total = jnp.sum(acc_ref[...]) * inv_n  # one XLU reduce + 1/n multiply
        out_ref[...] = jnp.full(out_ref.shape, total, dtype=jnp.float32)


def detection_loss(pred_boxes, pred_scores, gt_boxes, gt_labels,
                   *, tile_rows=4096):
    """Matches DetectionLoss.forward: returns only the localization loss.

    pred_scores / gt_labels are accepted but unused, exactly like the PyTorch
    module (its BCEWithLogitsLoss is never evaluated in forward).
    tile_rows: 4096 is safe everywhere (fits v5e's 16 MiB scoped-VMEM default);
    use 8192 on v6e/v7x for lower per-step overhead.
    """
    del pred_scores, gt_labels  # unused in the reference forward
    assert pred_boxes.shape == gt_boxes.shape

    n_elems = math.prod(pred_boxes.shape)
    inv_n = 1.0 / float(n_elems)

    pb = pred_boxes.reshape(-1)
    gb = gt_boxes.reshape(-1)

    n_main = (n_elems // _LANES) * _LANES      # 128-aligned prefix
    tail = n_elems - n_main                    # < 128 elements

    loss = jnp.float32(0.0)

    if tail:
        # Tiny (<128 element) remainder handled with plain jnp in the wrapper.
        dt = pb[n_main:].astype(jnp.float32) - gb[n_main:].astype(jnp.float32)
        adt = jnp.abs(dt)
        loss = loss + jnp.sum(jnp.where(adt < 1.0, 0.5 * dt * dt, adt - 0.5)) * inv_n

    if n_main:
        rows = n_main // _LANES
        if n_main == n_elems:
            # Free reshape (row-major bitcast), no copy, no padding.
            pb2 = pb.reshape(rows, _LANES)
            gb2 = gb.reshape(rows, _LANES)
        else:
            # Unaligned element count: slice the 128-aligned prefix.
            # TODO(synk): this prefix slice materializes one copy in XLA; a
            # manual-DMA (pl.ANY) variant could avoid it but is not worth the
            # complexity for the rare non-128-aligned case.
            pb2 = pb[:n_main].reshape(rows, _LANES)
            gb2 = gb[:n_main].reshape(rows, _LANES)

        if rows <= int(tile_rows):
            tile_r = rows                       # single block == full array dims
        else:
            tile_r = max(16, (int(tile_rows) // 16) * 16)  # multiple of 16 (bf16 ok)
        num_tiles = pl.cdiv(rows, tile_r)
        mask_tail = (rows % tile_r) != 0

        kernel = functools.partial(
            _smooth_l1_sum_kernel,
            inv_n=inv_n, rows_total=rows, tile_r=tile_r, mask_tail=mask_tail)

        itemsize = jnp.dtype(pb2.dtype).itemsize
        cost = pl.CostEstimate(
            flops=6 * n_main,
            transcendentals=0,
            bytes_accessed=2 * n_main * itemsize + _SUBLANES * _LANES * 4)

        in_spec = pl.BlockSpec((tile_r, _LANES), lambda k: (k, 0))
        out_spec = pl.BlockSpec((_SUBLANES, _LANES), lambda k: (0, 0))

        main = pl.pallas_call(
            kernel,
            out_shape=jax.ShapeDtypeStruct((_SUBLANES, _LANES), jnp.float32),
            grid=(num_tiles,),
            in_specs=[in_spec, in_spec],
            out_specs=out_spec,
            scratch_shapes=[pltpu.VMEM((tile_r, _LANES), jnp.float32)],
            compiler_params=pltpu.CompilerParams(
                dimension_semantics=("arbitrary",)),
            cost_estimate=cost,
        )(pb2, gb2)

        loss = loss + main[0, 0]

    return loss


if __name__ == "__main__":
    key = jax.random.PRNGKey(0)
    k1, k2, k3, k4 = jax.random.split(key, 4)

    # Small shapes consistent with the module: 2 images x 64 anchors x 4 box
    # coords (and 3-class scores/labels, which the forward ignores).
    B, N, C_BOX, C_CLS = 2, 64, 4, 3
    pred_boxes = jax.random.normal(k1, (B, N, C_BOX), dtype=jnp.float32)
    gt_boxes = jax.random.normal(k2, (B, N, C_BOX), dtype=jnp.float32)
    pred_scores = jax.random.normal(k3, (B, N, C_CLS), dtype=jnp.float32)
    gt_labels = (jax.random.uniform(k4, (B, N, C_CLS)) > 0.5).astype(jnp.float32)

    loss = detection_loss(pred_boxes, pred_scores, gt_boxes, gt_labels)
    loss = jax.block_until_ready(loss)

    # Pure-JAX reference (SmoothL1, beta=1.0, mean reduction).
    d = pred_boxes - gt_boxes
    ad = jnp.abs(d)
    ref = jnp.mean(jnp.where(ad < 1.0, 0.5 * d * d, ad - 0.5))
    assert jnp.allclose(loss, ref, rtol=1e-5, atol=1e-6), (loss, ref)

    print("KERNEL_OK")
</pallas_src>

<mosaic_0001>
module attributes {stable_mosaic.version = 11 : i64} {
  func.func @_smooth_l1_sum_kernel(%arg0: i32, %arg1: memref<4x128xf32, #tpu.memory_space<vmem>>, %arg2: memref<4x128xf32, #tpu.memory_space<vmem>>, %arg3: memref<8x128xf32, #tpu.memory_space<vmem>>, %arg4: memref<4x128xf32, #tpu.memory_space<vmem>>) attributes {dimension_semantics = [#tpu.dimension_semantics<arbitrary>], iteration_bounds = array<i64: 1>, scalar_prefetch = 0 : i64, scratch_operands = 1 : i64, tpu.core_type = #tpu.core_type<tc>, window_params = [{transform_indices = @transform_0, window_bounds = array<i64: 4, 128>}, {transform_indices = @transform_1, window_bounds = array<i64: 4, 128>}, {pipeline_mode = #tpu.pipeline_mode<synchronous>, transform_indices = @transform_2, window_bounds = array<i64: 8, 128>}]} {
    %c0_i32 = arith.constant 0 : i32
    %0 = arith.cmpi eq, %arg0, %c0_i32 : i32
    %1 = arith.extui %0 : i1 to i32
    %c0_i32_0 = arith.constant 0 : i32
    %2 = arith.cmpi ne, %1, %c0_i32_0 : i32
    scf.if %2 {
      %cst_12 = arith.constant 0.000000e+00 : f32
      %21 = vector.broadcast %cst_12 : f32 to vector<4x128xf32>
      %c0_13 = arith.constant 0 : index
      %c0_14 = arith.constant 0 : index
      %22 = vector.load %arg4[%c0_13, %c0_14] : memref<4x128xf32, #tpu.memory_space<vmem>>, vector<4x128xf32>
      tpu.vector_store %arg4[%c0_13, %c0_14], %21 {strides = array<i32>} : memref<4x128xf32, #tpu.memory_space<vmem>>, vector<4x128xf32>,
    } else {
    }
    %c0 = arith.constant 0 : index
    %c0_1 = arith.constant 0 : index
    %3 = vector.load %arg1[%c0, %c0_1] : memref<4x128xf32, #tpu.memory_space<vmem>>, vector<4x128xf32>
    %c0_2 = arith.constant 0 : index
    %c0_3 = arith.constant 0 : index
    %4 = vector.load %arg2[%c0_2, %c0_3] : memref<4x128xf32, #tpu.memory_space<vmem>>, vector<4x128xf32>
    %5 = arith.subf %3, %4 : vector<4x128xf32>
    %6 = math.absf %5 : vector<4x128xf32>
    %cst = arith.constant 1.000000e+00 : f32
    %7 = vector.broadcast %cst : f32 to vector<4x128xf32>
    %8 = arith.cmpf olt, %6, %7 : vector<4x128xf32>
    %cst_4 = arith.constant 5.000000e-01 : f32
    %9 = vector.broadcast %cst_4 : f32 to vector<4x128xf32>
    %10 = arith.mulf %9, %5 : vector<4x128xf32>
    %11 = arith.mulf %10, %5 : vector<4x128xf32>
    %cst_5 = arith.constant 5.000000e-01 : f32
    %12 = vector.broadcast %cst_5 : f32 to vector<4x128xf32>
    %13 = arith.subf %6, %12 : vector<4x128xf32>
    %14 = arith.select %8, %11, %13 : vector<4x128xi1>, vector<4x128xf32>
    %c0_6 = arith.constant 0 : index
    %c0_7 = arith.constant 0 : index
    %15 = vector.load %arg4[%c0_6, %c0_7] : memref<4x128xf32, #tpu.memory_space<vmem>>, vector<4x128xf32>
    %16 = arith.addf %15, %14 : vector<4x128xf32>
    %c0_8 = arith.constant 0 : index
    %c0_9 = arith.constant 0 : index
    %17 = vector.load %arg4[%c0_8, %c0_9] : memref<4x128xf32, #tpu.memory_space<vmem>>, vector<4x128xf32>
    tpu.vector_store %arg4[%c0_8, %c0_9], %16 {strides = array<i32>} : memref<4x128xf32, #tpu.memory_space<vmem>>, vector<4x128xf32>,
    %c0_i32_10 = arith.constant 0 : i32
    %18 = arith.cmpi eq, %arg0, %c0_i32_10 : i32
    %19 = arith.extui %18 : i1 to i32
    %c0_i32_11 = arith.constant 0 : i32
    %20 = arith.cmpi ne, %19, %c0_i32_11 : i32
    scf.if %20 {
      %c0_12 = arith.constant 0 : index
      %c0_13 = arith.constant 0 : index
      %21 = vector.load %arg4[%c0_12, %c0_13] : memref<4x128xf32, #tpu.memory_space<vmem>>, vector<4x128xf32>
      %22 = vector.shape_cast %21 : vector<4x128xf32> to vector<1x4x128xf32>
      %cst_14 = arith.constant dense<0.000000e+00> : vector<1xf32>
      %23 = vector.multi_reduction <add>, %22, %cst_14 [1, 2] : vector<1x4x128xf32> to vector<1xf32>
      %24 = vector.shape_cast %23 : vector<1xf32> to vector<1x1x1xf32>
      %25 = vector.extract %24[0, 0, 0] : f32 from vector<1x1x1xf32>
      %cst_15 = arith.constant 0.001953125 : f32
      %26 = arith.mulf %25, %cst_15 : f32
      %27 = vector.broadcast %26 : f32 to vector<8x128xf32>
      %c0_16 = arith.constant 0 : index
      %c0_17 = arith.constant 0 : index
      %28 = vector.load %arg3[%c0_16, %c0_17] : memref<8x128xf32, #tpu.memory_space<vmem>>, vector<8x128xf32>
      tpu.vector_store %arg3[%c0_16, %c0_17], %27 {strides = array<i32>} : memref<8x128xf32, #tpu.memory_space<vmem>>, vector<8x128xf32>,
    } else {
    }
    return
  }
  func.func @transform_0(%arg0: i32) -> (i32, i32) {
    %c0_i32 = arith.constant 0 : i32
    %c0_i32_0 = arith.constant 0 : i32
    return %arg0, %c0_i32 : i32, i32
  }
  func.func @transform_1(%arg0: i32) -> (i32, i32) {
    %c0_i32 = arith.constant 0 : i32
    %c0_i32_0 = arith.constant 0 : i32
    return %arg0, %c0_i32 : i32, i32
  }
  func.func @transform_2(%arg0: i32) -> (i32, i32) {
    %c0_i32 = arith.constant 0 : i32
    %c0_i32_0 = arith.constant 0 : i32
    %c0_i32_1 = arith.constant 0 : i32
    return %c0_i32, %c0_i32_0 : i32, i32
  }
}

</mosaic_0001>

<llo_original>
// kernel: tpu_custom_call.1
$region0: #{tpu_custom_call.1}
  #allocation0 [shape = 'u32[]', space=smem, size = 0x4, offset = 0x4, fixed_abs, tag = 'smem constant byte address 0x4 - core index']
  #allocation1 [shape = 'u32[144,128]{1,0:T(1,128)}', space=vmem, size = 0x12000, scoped, tag = 'internal scratch']
  #allocation2 [shape = 'f32[4,128]{1,0:T(4,128)}', space=vmem, size = 0x800, scoped, tag = 'scratch operand']
  %s0 = inlined_call_operand.hbm [shape: f32[4,128], index: 0, kind: input, shape index: {}]
  %s1 = inlined_call_operand.hbm [shape: f32[4,128], index: 1, kind: input, shape index: {}]
  %s2 = inlined_call_operand.hbm [shape: f32[8,128], index: 2, kind: output, shape index: {}]
  %s3 = sld [smem:[#allocation0]]
  $region34: #{tpu_custom_call.1} parent=0
    _
  %s5 = ssub.s32 1, %s3
  %s6 = scalar_select 0, %s5, %s3
  $region1: #{tpu_custom_call.1} parent=0
    #allocation3 [shape = 'u8[2048]{0}', space=vmem, size = 0x800, scoped, tag = 'input window, operand 0, single buffered']
    #allocation4 [shape = 's32[1]{0}', space=sflag, size = 0x4, scoped, tag = 'scoped memory for tpu_custom_call.1']
    #allocation5 [shape = 's32[1]{0}', space=sflag, size = 0x4, scoped, tag = 'scoped memory for tpu_custom_call.1']
    #allocation6 [shape = 'u8[2048]{0}', space=vmem, size = 0x800, scoped, tag = 'input window, operand 1, single buffered']
    #allocation7 [shape = 's32[1]{0}', space=sflag, size = 0x4, scoped, tag = 'scoped memory for tpu_custom_call.1']
    #allocation8 [shape = 'u8[4096]{0}', space=vmem, size = 0x1000, scoped, tag = 'output window, operand 0, single buffered']
    %7 = vsyncpa [#allocation4], 0
    %8 = vsyncpa [#allocation7], 0
    %9 = vsyncpa [#allocation5], 0
    // Predicated region
    $region2: #{tpu_custom_call.1} parent=1 // pred_check
      _
    $region3: #{tpu_custom_call.1} parent=1 // pred_check_branch
      %11 = sbr.rel (0) target = $region5
    $region4: #{tpu_custom_call.1} parent=1 // pred_region
      %s13 = ssub.s32 64, 64
      %14 = vsyncadd [#allocation4], %s13
      %s16 = sshll.u32 [#allocation3], 4
      %s17 = int_to_ptr.vmem [resolvable:$true] %s16
      %19 = dma.hbm_to_vmem [thread:$0]  %s0, 64, %s17, [#allocation4]
    $region5: #{tpu_custom_call.1} parent=1 // pred_fallthru
      _
    // Predicated region
    $region6: #{tpu_custom_call.1} parent=1 // pred_check
      _
    $region7: #{tpu_custom_call.1} parent=1 // pred_check_branch
      %21 = sbr.rel (0) target = $region9
    $region8: #{tpu_custom_call.1} parent=1 // pred_region
      %s23 = ssub.s32 64, 64
      %24 = vsyncadd [#allocation7], %s23
      %s26 = sshll.u32 [#allocation6], 4
      %s27 = int_to_ptr.vmem [resolvable:$true] %s26
      %29 = dma.hbm_to_vmem [thread:$0]  %s1, 64, %s27, [#allocation7]
    $region9: #{tpu_custom_call.1} parent=1 // pred_fallthru
      _
    // Predicated region
    $region10: #{tpu_custom_call.1} parent=1 // pred_check
      _
    $region11: #{tpu_custom_call.1} parent=1 // pred_check_branch
      %31 = sbr.rel (0) target = $region13
    $region12: #{tpu_custom_call.1} parent=1 // pred_region
      %32 = dma.done [#allocation4], 64
    $region13: #{tpu_custom_call.1} parent=1 // pred_fallthru
      _
    // Predicated region
    $region14: #{tpu_custom_call.1} parent=1 // pred_check
      _
    $region15: #{tpu_custom_call.1} parent=1 // pred_check_branch
      %34 = sbr.rel (0) target = $region17
    $region16: #{tpu_custom_call.1} parent=1 // pred_region
      %35 = dma.done [#allocation7], 64
    $region17: #{tpu_custom_call.1} parent=1 // pred_fallthru
      _
    %p36 = scmp.eq.s32.totalorder 0, 0
    // Predicated region
    $region18: #{tpu_custom_call.1} parent=1 // pred_check
      %p37 = pneg %p36
    $region19: #{tpu_custom_call.1} parent=1 // pred_check_branch
      %39 = sbr.rel (%p37) target = $region21
    $region20: #{tpu_custom_call.1} parent=1 // pred_region
      %40 = vst [vmem:[#allocation2] sm:$0xf] 0.0
    $region21: #{tpu_custom_call.1} parent=1 // pred_fallthru
      _
    %v41 = vld [vmem:[#allocation3] sm:$0xf]
    %v42 = vld [vmem:[#allocation6] sm:$0xf]
    %v43 = vsub.f32 %v41, %v42
    %v44 = vand.u32 2147483647, %v43
    %vm45 = vcmp.lt.f32.partialorder %v44, 1.0
    %v46 = vmul.f32 %v43, 0.5
    %v47 = vmul.f32 %v46, %v43
    %v48 = vsub.f32 %v44, 0.5
    %v49 = vsel %vm45, %v47, %v48
    %v50 = vld [vmem:[#allocation2] sm:$0xf]
    %v51 = vadd.f32 %v50, %v49
    %52 = vst [vmem:[#allocation2] sm:$0xf] %v51
    // Predicated region
    $region22: #{tpu_custom_call.1} parent=1 // pred_check
      %p53 = pneg %p36
    $region23: #{tpu_custom_call.1} parent=1 // pred_check_branch
      %55 = sbr.rel (%p53) target = $region25
    $region24: #{tpu_custom_call.1} parent=1 // pred_region
      %v56 = vld [vmem:[#allocation2] sm:$0xf]
      %vm57 = vcmask 1043456
      %v58 = vsel %vm57, %v56, 0.0
      %59 = vadd.xlane.f32.xlu0 %v58
      %v60 = vpop.xlane.xlu0 %59
      %v61 = vrot.slane %v60, 4
      %v62 = vadd.f32 %v60, %v61
      %v63 = vrot.slane %v62, 2
      %v64 = vadd.f32 %v62, %v63
      %v65 = vrot.slane %v64, 1
      %v66 = vadd.f32 %v64, %v65
      %s67 = vtos %v66
      %s68 = smul.f32 %s67, 0.001953125
      %v69 = vstv %s68
      %70 = vst [vmem:[#allocation8] sm:$0xff] %v69
    $region25: #{tpu_custom_call.1} parent=1 // pred_fallthru
      _
    // Predicated region
    $region26: #{tpu_custom_call.1} parent=1 // pred_check
      _
    $region27: #{tpu_custom_call.1} parent=1 // pred_check_branch
      %72 = sbr.rel (0) target = $region29
    $region28: #{tpu_custom_call.1} parent=1 // pred_region
      %s74 = ssub.s32 128, 128
      %75 = vsyncadd [#allocation5], %s74
      %s77 = sshll.u32 [#allocation8], 4
      %s78 = int_to_ptr.vmem [resolvable:$true] %s77
      %80 = dma.vmem_to_hbm [thread:$0]  %s78, 128, %s2, [#allocation5]
    $region29: #{tpu_custom_call.1} parent=1 // pred_fallthru
      _
    // Predicated region
    $region30: #{tpu_custom_call.1} parent=1 // pred_check
      _
    $region31: #{tpu_custom_call.1} parent=1 // pred_check_branch
      %82 = sbr.rel (0) target = $region33
    $region32: #{tpu_custom_call.1} parent=1 // pred_region
      %83 = dma.done [#allocation5], 128
    $region33: #{tpu_custom_call.1} parent=1 // pred_fallthru
      _
    %84 = vsyncpa [#allocation4], 1
    %85 = vsyncpa [#allocation7], 1
    %86 = vsyncpa [#allocation5], 1

</llo_original>
